<compile_context>
chip_gen: v6e
topology: v6e:2x2x1
jax: 0.10.0
libtpu: 0.0.40
codegen_flags: <defaults>
</compile_context>

<pallas_src>
import functools

import jax
import jax.numpy as jnp
from jax.experimental import pallas as pl
from jax.experimental.pallas import tpu as pltpu

BN_EPS = 1e-5


def _round_up(x, m):
    return ((x + m - 1) // m) * m


def _vmem_capacity_bytes():
    """Physical VMEM per TensorCore (v5e/v6e: 128 MiB, v7x: 64 MiB)."""
    try:
        cap = int(pltpu.get_tpu_info().vmem_capacity_bytes)
        if cap > 0:
            return cap
    except Exception:
        pass
    return 64 * 1024 * 1024  # conservative fallback (v7x-sized)


def linear_bn_relu_kernel(x_ref, w_ref, gamma_ref, beta_ref, o_ref,
                          *, inv_b, tk, x_resident):
    """Grid = (n, k): n over OUT tiles (parallel), k over IN tiles (reduce last).

    The f32 output block is resident across the k axis and doubles as the
    accumulator (no separate VMEM scratch); BN+ReLU runs in place at k==last.
    """
    k = pl.program_id(1)

    @pl.when(k == 0)
    def _init():
        o_ref[...] = jnp.zeros_like(o_ref)

    if x_resident:
        # x fully resident in VMEM: slice the current K chunk (aligned start).
        x_tile = x_ref[:, pl.ds(pl.multiple_of(k * tk, tk), tk)]
    else:
        x_tile = x_ref[...]

    # bf16 x bf16 -> f32 accumulation (full-rate MXU).
    o_ref[...] += jnp.dot(x_tile, w_ref[...],
                          preferred_element_type=jnp.float32)

    @pl.when(k == pl.num_programs(1) - 1)
    def _epilogue():
        y = o_ref[...]                                     # (B_pad, tn) f32
        # One-pass batch statistics.  Padded x rows are exactly zero and there
        # is no bias, so they contribute 0 to both sums: dividing by the TRUE
        # batch size gives the correct mean / biased variance without masking.
        s1 = jnp.sum(y, axis=0, keepdims=True)             # (1, tn)
        s2 = jnp.sum(y * y, axis=0, keepdims=True)         # (1, tn)
        mean = s1 * inv_b
        var = jnp.maximum(s2 * inv_b - mean * mean, 0.0)
        # Fused BN -> one scale/shift FMA per element; rsqrt lands on the EUP.
        scale = gamma_ref[...] * jax.lax.rsqrt(var + BN_EPS)
        shift = beta_ref[...] - mean * scale
        # Dropout(p=0.0) is identity; then ReLU.
        o_ref[...] = jnp.maximum(y * scale + shift, 0.0).astype(o_ref.dtype)


def prepare_linear_layer_params(w, b, gamma, beta, *, tile_n=512, tile_k=512,
                                compute_dtype=jnp.bfloat16):
    """Pad + cast parameters ONCE (model-init time).

    w: (IN, OUT); b/gamma/beta: (OUT,).  The Linear bias `b` is accepted for
    API parity but is mathematically cancelled by training-mode BatchNorm's
    mean subtraction, so it is not used by the kernel.
    """
    del b  # cancelled by the BN mean subtraction (no-op up to rounding)

    IN, OUT = w.shape
    tn = min(tile_n, _round_up(OUT, 128))       # OUT tile, multiple of 128
    tk = min(tile_k, _round_up(IN, 128))        # IN  tile, multiple of 128
    IN_pad = _round_up(IN, tk)
    OUT_pad = _round_up(OUT, tn)

    w_p = jnp.pad(w, ((0, IN_pad - IN), (0, OUT_pad - OUT))).astype(compute_dtype)
    g_p = jnp.pad(gamma.astype(jnp.float32), (0, OUT_pad - OUT),
                  constant_values=1.0).reshape(1, OUT_pad)
    be_p = jnp.pad(beta.astype(jnp.float32), (0, OUT_pad - OUT)).reshape(1, OUT_pad)

    return dict(w=w_p, gamma=g_p, beta=be_p,
                IN=IN, OUT=OUT, IN_pad=IN_pad, OUT_pad=OUT_pad,
                tn=tn, tk=tk, compute_dtype=compute_dtype)


def linear_layer_forward(x, params):
    """x: (B, IN) f32 -> (B, OUT) f32."""
    IN, OUT = params["IN"], params["OUT"]
    IN_pad, OUT_pad = params["IN_pad"], params["OUT_pad"]
    tn, tk = params["tn"], params["tk"]
    cdt = params["compute_dtype"]
    itemsize = jnp.dtype(cdt).itemsize

    B = x.shape[0]
    # bf16 packs 16 rows per vreg sublane group; keep (16,128) alignment.
    B_pad = _round_up(B, 16 if itemsize == 2 else 8)

    # Only x is padded (and cast) per call; parameters were prepared at init.
    x_p = jnp.pad(x, ((0, B_pad - B), (0, IN_pad - IN))).astype(cdt)

    grid = (OUT_pad // tn, IN_pad // tk)        # (N parallel, K reduce-last)

    # ---- VMEM budgeting (per-generation: 128 MiB v5e/v6e, 64 MiB v7x) ------
    vmem_budget = int(0.80 * _vmem_capacity_bytes())   # leave compiler headroom

    x_full_bytes = B_pad * IN_pad * itemsize
    # Keep x fully resident when it is a small fraction of the budget
    # (counted x2 in case the pipeliner still double-buffers the block).
    x_resident = (2 * x_full_bytes) <= vmem_budget // 4

    if x_resident:
        x_spec = pl.BlockSpec((B_pad, IN_pad), lambda n, k: (0, 0))
        x_buf_bytes = 2 * x_full_bytes
    else:
        x_spec = pl.BlockSpec((B_pad, tk), lambda n, k: (0, k))
        x_buf_bytes = 2 * B_pad * tk * itemsize

    footprint = (x_buf_bytes
                 + 2 * tk * tn * itemsize        # w tiles (double-buffered)
                 + 2 * B_pad * tn * 4            # resident f32 out/acc blocks
                 + 4 * tn * 4)                   # gamma / beta tiles
    vmem_limit = int(min(vmem_budget, max(footprint + (8 << 20), 16 << 20)))

    x_hbm_reads = 1 if x_resident else grid[0]
    cost = pl.CostEstimate(
        flops=2 * B_pad * IN_pad * OUT_pad,
        transcendentals=OUT_pad,
        bytes_accessed=int(x_hbm_reads * B_pad * IN_pad * itemsize
                           + IN_pad * OUT_pad * itemsize
                           + B_pad * OUT_pad * 4
                           + 2 * OUT_pad * 4),
    )

    kernel = functools.partial(linear_bn_relu_kernel,
                               inv_b=1.0 / float(B), tk=tk,
                               x_resident=x_resident)

    out_p = pl.pallas_call(
        kernel,
        out_shape=jax.ShapeDtypeStruct((B_pad, OUT_pad), jnp.float32),
        grid_spec=pltpu.PrefetchScalarGridSpec(
            num_scalar_prefetch=0,
            grid=grid,
            in_specs=[
                x_spec,                                           # x
                pl.BlockSpec((tk, tn), lambda n, k: (k, n)),      # w
                pl.BlockSpec((1, tn), lambda n, k: (0, n)),       # gamma
                pl.BlockSpec((1, tn), lambda n, k: (0, n)),       # beta
            ],
            out_specs=pl.BlockSpec((B_pad, tn), lambda n, k: (0, n)),
        ),
        compiler_params=pltpu.CompilerParams(
            dimension_semantics=("parallel", "arbitrary"),
            vmem_limit_bytes=vmem_limit,
        ),
        cost_estimate=cost,
    )(x_p, params["w"], params["gamma"], params["beta"])

    return out_p[:B, :OUT]


def reference_forward(x, w, b, gamma, beta):
    """Pure-JAX f32 reference with full module semantics (incl. Linear bias)."""
    y = x @ w + b
    mean = jnp.mean(y, axis=0, keepdims=True)
    var = jnp.mean((y - mean) ** 2, axis=0, keepdims=True)
    y = (y - mean) / jnp.sqrt(var + BN_EPS) * gamma + beta
    return jnp.maximum(y, 0.0)


if __name__ == "__main__":
    # Small shapes that still exercise padding (B 12->16, IN 480->512,
    # OUT 1000->1024) and a real (2, 2) grid with 512x256 tiles.
    B, IN_PLANE, OUT_PLANE = 12, 480, 1000

    key = jax.random.PRNGKey(0)
    kx, kw, kb = jax.random.split(key, 3)

    x = jax.random.normal(kx, (B, IN_PLANE), dtype=jnp.float32)
    bound = 1.0 / (IN_PLANE ** 0.5)
    w = jax.random.uniform(kw, (IN_PLANE, OUT_PLANE), jnp.float32, -bound, bound)
    b = jax.random.uniform(kb, (OUT_PLANE,), jnp.float32, -bound, bound)
    gamma = jnp.ones((OUT_PLANE,), jnp.float32)   # BatchNorm1d default weight
    beta = jnp.zeros((OUT_PLANE,), jnp.float32)   # BatchNorm1d default bias

    # Parameters padded / cast to bf16 ONCE (init time); x padded per call.
    params = prepare_linear_layer_params(w, b, gamma, beta,
                                         tile_n=512, tile_k=256)

    out = linear_layer_forward(x, params)
    out = jax.block_until_ready(out)

    ref = reference_forward(x, w, b, gamma, beta)
    assert out.shape == (B, OUT_PLANE)
    max_err = float(jnp.max(jnp.abs(out - ref)))
    # bf16 MXU inputs (f32 accumulation) -> slightly looser tolerance vs f32 ref.
    assert jnp.allclose(out, ref, atol=3e-2, rtol=3e-2), max_err

    print("KERNEL_OK")
</pallas_src>

<mosaic_0001>
module attributes {stable_mosaic.version = 11 : i64} {
  func.func @linear_bn_relu_kernel(%arg0: i32, %arg1: i32, %arg2: memref<16x512xbf16, #tpu.memory_space<vmem>>, %arg3: memref<256x512xbf16, #tpu.memory_space<vmem>>, %arg4: memref<1x512xf32, #tpu.memory_space<vmem>>, %arg5: memref<1x512xf32, #tpu.memory_space<vmem>>, %arg6: memref<16x512xf32, #tpu.memory_space<vmem>>) attributes {dimension_semantics = [#tpu.dimension_semantics<parallel>, #tpu.dimension_semantics<arbitrary>], iteration_bounds = array<i64: 2, 2>, scalar_prefetch = 0 : i64, scratch_operands = 0 : i64, tpu.core_type = #tpu.core_type<tc>, window_params = [{pipeline_mode = #tpu.pipeline_mode<synchronous>, transform_indices = @transform_0, window_bounds = array<i64: 16, 512>}, {transform_indices = @transform_1, window_bounds = array<i64: 256, 512>}, {transform_indices = @transform_2, window_bounds = array<i64: 1, 512>}, {transform_indices = @transform_3, window_bounds = array<i64: 1, 512>}, {transform_indices = @transform_4, window_bounds = array<i64: 16, 512>}]} {
    %c0_i32 = arith.constant 0 : i32
    %0 = arith.cmpi eq, %arg1, %c0_i32 : i32
    %1 = arith.extui %0 : i1 to i32
    %c0_i32_0 = arith.constant 0 : i32
    %2 = arith.cmpi ne, %1, %c0_i32_0 : i32
    scf.if %2 {
      %cst_8 = arith.constant 0.000000e+00 : f32
      %15 = vector.broadcast %cst_8 : f32 to vector<16x512xf32>
      %c0_9 = arith.constant 0 : index
      %c0_10 = arith.constant 0 : index
      %16 = vector.load %arg6[%c0_9, %c0_10] : memref<16x512xf32, #tpu.memory_space<vmem>>, vector<16x512xf32>
      tpu.vector_store %arg6[%c0_9, %c0_10], %15 {strides = array<i32>} : memref<16x512xf32, #tpu.memory_space<vmem>>, vector<16x512xf32>,
    } else {
    }
    %c256_i32 = arith.constant 256 : i32
    %3 = arith.muli %arg1, %c256_i32 : i32
    %4 = tpu.assume_multiple %3, 256 : i32
    %c0 = arith.constant 0 : index
    %5 = arith.index_cast %4 : i32 to index
    %6 = vector.load %arg2[%c0, %5] : memref<16x512xbf16, #tpu.memory_space<vmem>>, vector<16x256xbf16>
    %c0_1 = arith.constant 0 : index
    %c0_2 = arith.constant 0 : index
    %7 = vector.load %arg6[%c0_1, %c0_2] : memref<16x512xf32, #tpu.memory_space<vmem>>, vector<16x512xf32>
    %c0_3 = arith.constant 0 : index
    %c0_4 = arith.constant 0 : index
    %8 = vector.load %arg3[%c0_3, %c0_4] : memref<256x512xbf16, #tpu.memory_space<vmem>>, vector<256x512xbf16>
    %cst = arith.constant dense<0.000000e+00> : vector<16x512xf32>
    %9 = tpu.matmul %6, %8, %cst {dimension_numbers = #tpu.dot_dimension_numbers<[1], [0], [0], [1], [0, 0, 1, 1], [], []>} : vector<16x256xbf16>, vector<256x512xbf16>, vector<16x512xf32> -> vector<16x512xf32>
    %10 = arith.addf %7, %9 : vector<16x512xf32>
    %c0_5 = arith.constant 0 : index
    %c0_6 = arith.constant 0 : index
    %11 = vector.load %arg6[%c0_5, %c0_6] : memref<16x512xf32, #tpu.memory_space<vmem>>, vector<16x512xf32>
    tpu.vector_store %arg6[%c0_5, %c0_6], %10 {strides = array<i32>} : memref<16x512xf32, #tpu.memory_space<vmem>>, vector<16x512xf32>,
    %c1_i32 = arith.constant 1 : i32
    %12 = arith.cmpi eq, %arg1, %c1_i32 : i32
    %13 = arith.extui %12 : i1 to i32
    %c0_i32_7 = arith.constant 0 : i32
    %14 = arith.cmpi ne, %13, %c0_i32_7 : i32
    scf.if %14 {
      %c0_8 = arith.constant 0 : index
      %c0_9 = arith.constant 0 : index
      %15 = vector.load %arg6[%c0_8, %c0_9] : memref<16x512xf32, #tpu.memory_space<vmem>>, vector<16x512xf32>
      %cst_10 = arith.constant dense<0.000000e+00> : vector<512xf32>
      %16 = vector.multi_reduction <add>, %15, %cst_10 [0] : vector<16x512xf32> to vector<512xf32>
      %17 = vector.shape_cast %16 : vector<512xf32> to vector<1x512xf32>
      %18 = arith.mulf %15, %15 : vector<16x512xf32>
      %cst_11 = arith.constant dense<0.000000e+00> : vector<512xf32>
      %19 = vector.multi_reduction <add>, %18, %cst_11 [0] : vector<16x512xf32> to vector<512xf32>
      %20 = vector.shape_cast %19 : vector<512xf32> to vector<1x512xf32>
      %cst_12 = arith.constant 0.0833333358 : f32
      %21 = vector.broadcast %cst_12 : f32 to vector<1x512xf32>
      %22 = arith.mulf %17, %21 : vector<1x512xf32>
      %cst_13 = arith.constant 0.0833333358 : f32
      %23 = vector.broadcast %cst_13 : f32 to vector<1x512xf32>
      %24 = arith.mulf %20, %23 : vector<1x512xf32>
      %25 = arith.mulf %22, %22 : vector<1x512xf32>
      %26 = arith.subf %24, %25 : vector<1x512xf32>
      %cst_14 = arith.constant 0.000000e+00 : f32
      %27 = vector.broadcast %cst_14 : f32 to vector<1x512xf32>
      %28 = arith.maximumf %26, %27 : vector<1x512xf32>
      %c0_15 = arith.constant 0 : index
      %c0_16 = arith.constant 0 : index
      %29 = vector.load %arg4[%c0_15, %c0_16] : memref<1x512xf32, #tpu.memory_space<vmem>>, vector<1x512xf32>
      %cst_17 = arith.constant 9.99999974E-6 : f32
      %30 = vector.broadcast %cst_17 : f32 to vector<1x512xf32>
      %31 = arith.addf %28, %30 : vector<1x512xf32>
      %32 = math.rsqrt %31 : vector<1x512xf32>
      %33 = arith.mulf %29, %32 : vector<1x512xf32>
      %c0_18 = arith.constant 0 : index
      %c0_19 = arith.constant 0 : index
      %34 = vector.load %arg5[%c0_18, %c0_19] : memref<1x512xf32, #tpu.memory_space<vmem>>, vector<1x512xf32>
      %35 = arith.mulf %22, %33 : vector<1x512xf32>
      %36 = arith.subf %34, %35 : vector<1x512xf32>
      %37 = vector.broadcast %33 : vector<1x512xf32> to vector<16x512xf32>
      %38 = arith.mulf %15, %37 : vector<16x512xf32>
      %39 = vector.broadcast %36 : vector<1x512xf32> to vector<16x512xf32>
      %40 = arith.addf %38, %39 : vector<16x512xf32>
      %cst_20 = arith.constant 0.000000e+00 : f32
      %41 = vector.broadcast %cst_20 : f32 to vector<16x512xf32>
      %42 = arith.maximumf %40, %41 : vector<16x512xf32>
      %c0_21 = arith.constant 0 : index
      %c0_22 = arith.constant 0 : index
      %43 = vector.load %arg6[%c0_21, %c0_22] : memref<16x512xf32, #tpu.memory_space<vmem>>, vector<16x512xf32>
      tpu.vector_store %arg6[%c0_21, %c0_22], %42 {strides = array<i32>} : memref<16x512xf32, #tpu.memory_space<vmem>>, vector<16x512xf32>,
    } else {
    }
    return
  }
  func.func @transform_0(%arg0: i32, %arg1: i32) -> (i32, i32) {
    %c0_i32 = arith.constant 0 : i32
    %c0_i32_0 = arith.constant 0 : i32
    %c0_i32_1 = arith.constant 0 : i32
    return %c0_i32, %c0_i32_0 : i32, i32
  }
  func.func @transform_1(%arg0: i32, %arg1: i32) -> (i32, i32) {
    %c0_i32 = arith.constant 0 : i32
    return %arg1, %arg0 : i32, i32
  }
  func.func @transform_2(%arg0: i32, %arg1: i32) -> (i32, i32) {
    %c0_i32 = arith.constant 0 : i32
    %c0_i32_0 = arith.constant 0 : i32
    return %c0_i32, %arg0 : i32, i32
  }
  func.func @transform_3(%arg0: i32, %arg1: i32) -> (i32, i32) {
    %c0_i32 = arith.constant 0 : i32
    %c0_i32_0 = arith.constant 0 : i32
    return %c0_i32, %arg0 : i32, i32
  }
  func.func @transform_4(%arg0: i32, %arg1: i32) -> (i32, i32) {
    %c0_i32 = arith.constant 0 : i32
    %c0_i32_0 = arith.constant 0 : i32
    return %c0_i32, %arg0 : i32, i32
  }
}

</mosaic_0001>

<llo_original>
// kernel: tpu_custom_call.1
$region0: #{tpu_custom_call.1}
  #allocation0 [shape = 'u32[]', space=smem, size = 0x4, offset = 0x4, fixed_abs, tag = 'smem constant byte address 0x4 - core index']
  #allocation1 [shape = 'u32[144,128]{1,0:T(1,128)}', space=vmem, size = 0x12000, scoped, tag = 'internal scratch']
  %s0 = inlined_call_operand.hbm [shape: bf16[16,512], index: 0, kind: input, shape index: {}]
  %s1 = inlined_call_operand.hbm [shape: bf16[512,1024], index: 1, kind: input, shape index: {}]
  %s2 = inlined_call_operand.hbm [shape: f32[1,1024], index: 2, kind: input, shape index: {}]
  %s3 = inlined_call_operand.hbm [shape: f32[1,1024], index: 3, kind: input, shape index: {}]
  %s4 = inlined_call_operand.hbm [shape: f32[16,1024], index: 4, kind: output, shape index: {}]
  %s5 = sld [smem:[#allocation0]]
  $region73: #{tpu_custom_call.1} parent=0
    _
  %s7 = ssub.s32 1, %s5
  %s8 = scalar_select 0, %s7, %s5
  $region1: #{tpu_custom_call.1} parent=0
    #allocation2 [shape = 'u8[16384]{0}', space=vmem, size = 0x4000, scoped, tag = 'input window, operand 0, single buffered']
    #allocation3 [shape = 's32[2]{0}', space=sflag, size = 0x8, scoped, tag = 'scoped memory for tpu_custom_call.1']
    #allocation4 [shape = 's32[2]{0}', space=sflag, size = 0x8, scoped, tag = 'scoped memory for tpu_custom_call.1']
    #allocation5 [shape = 'u8[524288]{0}', space=vmem, size = 0x80000, scoped, tag = 'input window, operand 1']
    #allocation6 [shape = 's32[2]{0}', space=sflag, size = 0x8, scoped, tag = 'scoped memory for tpu_custom_call.1']
    #allocation7 [shape = 'u8[4096]{0}', space=vmem, size = 0x1000, scoped, tag = 'input window, operand 2']
    #allocation8 [shape = 'u8[4096]{0}', space=vmem, size = 0x1000, scoped, tag = 'input window, operand 3']
    #allocation9 [shape = 's32[2]{0}', space=sflag, size = 0x8, scoped, tag = 'scoped memory for tpu_custom_call.1']
    #allocation10 [shape = 'u8[65536]{0}', space=vmem, size = 0x10000, scoped, tag = 'output window, operand 0']
    %9 = vsyncpa [#allocation3], 0
    %10 = vsyncpa [#allocation6], 0
    %s11 = scalar_lea.sflag [#allocation6], 1
    %12 = vsyncpa %s11, 0
    %13 = vsyncpa [#allocation9], 0
    %s14 = scalar_lea.sflag [#allocation9], 1
    %15 = vsyncpa %s14, 0
    %16 = vsyncpa [#allocation4], 0
    %s17 = scalar_lea.sflag [#allocation4], 1
    %18 = vsyncpa %s17, 0
    loop: start=0, step=1, limit=6
    $region2: #{tpu_custom_call.1} parent=1 // loop_pre_header
      _
    $region3: #{tpu_custom_call.1} parent=1 // loop_header
      %s20 = sphi 0, %s24
      %p21 = scmp.ge.s32.totalorder %s20, 6
      %s27 = sphi 0, %s39
      %s28 = sphi 0, %s35
      %s29 = sphi 0, %s27
      %s30 = sphi 0, %s28
      %s31 = sphi 0, %s29
      %s32 = sphi 0, %s30
      %s40 = sphi 0, %s40
      %s42 = sphi 0, %s40
      %s43 = sphi 0, %s42
      %s57 = sphi 0, %s43
      %s65 = sphi 0, %s67
      %s68 = sphi 0, %s65
      %s69 = sphi 0, %s68
      %s85 = sphi 0, %s69
      %s91 = sphi 0, %s93
      %s94 = sphi 0, %s91
      %s95 = sphi 0, %s94
      %s111 = sphi 0, %s95
      %s117 = sphi 0, %s119
      %s120 = sphi 0, %s117
      %s121 = sphi 0, %s120
      %s137 = sphi 0, %s121
      %s143 = sphi 0, %s145
      %s146 = sphi 0, %s143
      %s147 = sphi 0, %s146
      %s163 = sphi 0, %s147
    $region4: #{tpu_custom_call.1} parent=1 // loop_header_branch
      %23 = sbr.rel (%p21) target = $region8
    $region5: #{tpu_custom_call.1} parent=1 // loop_body
      %s25 = ssub.s32 %s20, 1
      %s26 = ssub.s32 %s20, 2
      %s33 = sadd.s32 1, %s28
      %p34 = scmp.ge.s32.totalorder %s33, 2
      %s35 = scalar_select %p34, 0, %s33
      %s36 = sadd.s32 1, %s27
      %s37 = scalar_select %p34, %s36, %s27
      %p38 = scmp.ge.s32.totalorder %s37, 2
      %s39 = scalar_select %p38, 0, %s37
      %s41 = sadd.s32 %s40, 1
      %p44 = scmp.eq.s32.totalorder %s20, 3
      %p45 = scmp.ne.s32.totalorder %s40, %s42
      %p46 = scmp.eq.s32.totalorder %s20, 0
      %p47 = por %p45, %p46
      %p48 = scmp.ne.s32.totalorder %s40, %s42
      %p49 = scmp.eq.s32.totalorder %s25, 3
      %p50 = por %p48, %p49
      %p51 = scmp.ne.s32.totalorder %s42, %s43
      %p52 = scmp.eq.s32.totalorder %s25, 0
      %p53 = por %p51, %p52
      %p54 = scmp.ne.s32.totalorder %s42, %s43
      %p55 = scmp.eq.s32.totalorder %s26, 3
      %p56 = por %p54, %p55
      %p58 = scmp.ne.s32.totalorder %s43, %s57
      %p59 = scmp.eq.s32.totalorder %s26, 0
      %p60 = por %p58, %p59
      %s61 = ssub.s32 %s28, %s35
      %s62 = ssub.s32 %s27, %s39
      %s63 = sor.u32 %s61, %s62
      %p64 = scmp.eq.s32.totalorder %s63, 0
      %s66 = sadd.s32 %s65, 1
      %s67 = scalar_select %p64, %s65, %s66
      %p70 = pneg %p64
      %p71 = scmp.eq.s32.totalorder %s20, 3
      %p72 = por %p70, %p71
      %p73 = scmp.ne.s32.totalorder %s65, %s68
      %p74 = scmp.eq.s32.totalorder %s20, 0
      %p75 = por %p73, %p74
      %p76 = scmp.ne.s32.totalorder %s65, %s68
      %p77 = scmp.eq.s32.totalorder %s25, 3
      %p78 = por %p76, %p77
      %p79 = scmp.ne.s32.totalorder %s68, %s69
      %p80 = scmp.eq.s32.totalorder %s25, 0
      %p81 = por %p79, %p80
      %p82 = scmp.ne.s32.totalorder %s68, %s69
      %p83 = scmp.eq.s32.totalorder %s26, 3
      %p84 = por %p82, %p83
      %p86 = scmp.ne.s32.totalorder %s69, %s85
      %p87 = scmp.eq.s32.totalorder %s26, 0
      %p88 = por %p86, %p87
      %s89 = ssub.s32 %s27, %s39
      %p90 = scmp.eq.s32.totalorder %s89, 0
      %s92 = sadd.s32 %s91, 1
      %s93 = scalar_select %p90, %s91, %s92
      %p96 = pneg %p90
      %p97 = scmp.eq.s32.totalorder %s20, 3
      %p98 = por %p96, %p97
      %p99 = scmp.ne.s32.totalorder %s91, %s94
      %p100 = scmp.eq.s32.totalorder %s20, 0
      %p101 = por %p99, %p100
      %p102 = scmp.ne.s32.totalorder %s91, %s94
      %p103 = scmp.eq.s32.totalorder %s25, 3
      %p104 = por %p102, %p103
      %p105 = scmp.ne.s32.totalorder %s94, %s95
      %p106 = scmp.eq.s32.totalorder %s25, 0
      %p107 = por %p105, %p106
      %p108 = scmp.ne.s32.totalorder %s94, %s95
      %p109 = scmp.eq.s32.totalorder %s26, 3
      %p110 = por %p108, %p109
      %p112 = scmp.ne.s32.totalorder %s95, %s111
      %p113 = scmp.eq.s32.totalorder %s26, 0
      %p114 = por %p112, %p113
      %s115 = ssub.s32 %s27, %s39
      %p116 = scmp.eq.s32.totalorder %s115, 0
      %s118 = sadd.s32 %s117, 1
      %s119 = scalar_select %p116, %s117, %s118
      %p122 = pneg %p116
      %p123 = scmp.eq.s32.totalorder %s20, 3
      %p124 = por %p122, %p123
      %p125 = scmp.ne.s32.totalorder %s117, %s120
      %p126 = scmp.eq.s32.totalorder %s20, 0
      %p127 = por %p125, %p126
      %p128 = scmp.ne.s32.totalorder %s117, %s120
      %p129 = scmp.eq.s32.totalorder %s25, 3
      %p130 = por %p128, %p129
      %p131 = scmp.ne.s32.totalorder %s120, %s121
      %p132 = scmp.eq.s32.totalorder %s25, 0
      %p133 = por %p131, %p132
      %p134 = scmp.ne.s32.totalorder %s120, %s121
      %p135 = scmp.eq.s32.totalorder %s26, 3
      %p136 = por %p134, %p135
      %p138 = scmp.ne.s32.totalorder %s121, %s137
      %p139 = scmp.eq.s32.totalorder %s26, 0
      %p140 = por %p138, %p139
      %s141 = ssub.s32 %s27, %s39
      %p142 = scmp.eq.s32.totalorder %s141, 0
      %s144 = sadd.s32 %s143, 1
      %s145 = scalar_select %p142, %s143, %s144
      %p148 = pneg %p142
      %p149 = scmp.eq.s32.totalorder %s20, 3
      %p150 = por %p148, %p149
      %p151 = scmp.ne.s32.totalorder %s143, %s146
      %p152 = scmp.eq.s32.totalorder %s20, 0
      %p153 = por %p151, %p152
      %p154 = scmp.ne.s32.totalorder %s143, %s146
      %p155 = scmp.eq.s32.totalorder %s25, 3
      %p156 = por %p154, %p155
      %p157 = scmp.ne.s32.totalorder %s146, %s147
      %p158 = scmp.eq.s32.totalorder %s25, 0
      %p159 = por %p157, %p158
      %p160 = scmp.ne.s32.totalorder %s146, %s147
      %p161 = scmp.eq.s32.totalorder %s26, 3
      %p162 = por %p160, %p161
      %p164 = scmp.ne.s32.totalorder %s147, %s163
      %p165 = scmp.eq.s32.totalorder %s26, 0
      %p166 = por %p164, %p165
      %p167 = scmp.le.s32.totalorder 1, %s20
      %p168 = scmp.lt.s32.totalorder %s20, 5
      %p169 = pnand %p167, %p168
      %p170 = pneg %p169
      // Predicated region
      $region9: #{tpu_custom_call.1} parent=5 // pred_check
        _
      $region10: #{tpu_custom_call.1} parent=5 // pred_check_branch
        %172 = sbr.rel (%p169) target = $region12
      $region11: #{tpu_custom_call.1} parent=5 // pred_region
        %s173 = ssub.s32 %s20, 1
        // Predicated region
        $region13: #{tpu_custom_call.1} parent=11 // pred_check
          %p174 = pneg %p53
        $region14: #{tpu_custom_call.1} parent=11 // pred_check_branch
          %176 = sbr.rel (%p174) target = $region16
        $region15: #{tpu_custom_call.1} parent=11 // pred_region
          %s178 = ssub.s32 512, 512
          %179 = vsyncadd [#allocation3], %s178
          %s180 = sshll.u32 [#allocation2], 4
          %s181 = int_to_ptr.vmem [resolvable:$true] %s180
          %186 = dma.hbm_to_vmem [thread:$0]  %s0, 512, %s181, [#allocation3], 256, 256, 16
        $region16: #{tpu_custom_call.1} parent=11 // pred_fallthru
          _
      $region12: #{tpu_custom_call.1} parent=5 // pred_fallthru
        _
      %p187 = scmp.lt.s32.totalorder %s20, 4
      // Predicated region
      $region17: #{tpu_custom_call.1} parent=5 // pred_check
        %p188 = pneg %p187
      $region18: #{tpu_custom_call.1} parent=5 // pred_check_branch
        %190 = sbr.rel (%p188) target = $region20
      $region19: #{tpu_custom_call.1} parent=5 // pred_region
        // Predicated region
        $region21: #{tpu_custom_call.1} parent=19 // pred_check
          %p191 = pneg %p75
        $region22: #{tpu_custom_call.1} parent=19 // pred_check_branch
          %193 = sbr.rel (%p191) target = $region24
        $region23: #{tpu_custom_call.1} parent=19 // pred_region
          %s194 = sand.u32 %s20, 1
          %s195 = scalar_lea.sflag [#allocation6], %s194
          %s196 = sand.u32 %s65, 1
          %s197 = smul.addr %s196, 512
          %s198 = scalar_lea.vmem [#allocation5], %s197
          %s199 = smul.u32 32, %s28
          %s200 = smul.u32 4, %s27
          %s202 = ssub.s32 8192, 8192
          %203 = vsyncadd %s195, %s202
          %s204 = smul.addr %s199, 8
          %s205 = sadd.s32 %s200, %s204
          %s206 = smul.addr %s205, 64
          %s207 = scalar_lea.hbm %s1, %s206
          %s208 = sshll.u32 %s198, 4
          %s209 = int_to_ptr.vmem [resolvable:$true] %s208
          %214 = dma.hbm_to_vmem [thread:$0]  %s207, 8192, %s209, %s195, 512, 256, 16
        $region24: #{tpu_custom_call.1} parent=19 // pred_fallthru
          _
        // Predicated region
        $region25: #{tpu_custom_call.1} parent=19 // pred_check
          %p215 = pneg %p101
        $region26: #{tpu_custom_call.1} parent=19 // pred_check_branch
          %217 = sbr.rel (%p215) target = $region28
        $region27: #{tpu_custom_call.1} parent=19 // pred_region
          %s218 = sand.u32 %s20, 1
          %s219 = scalar_lea.sflag [#allocation6], %s218
          %s220 = sand.u32 %s91, 1
          %s221 = smul.addr %s220, 4
          %s222 = scalar_lea.vmem [#allocation7], %s221
          %s223 = smul.u32 4, %s27
          %s225 = ssub.s32 64, 64
          %226 = vsyncadd %s219, %s225
          %s227 = smul.addr %s223, 16
          %s228 = scalar_lea.hbm %s2, %s227
          %s230 = sshll.u32 %s222, 4
          %s231 = int_to_ptr.vmem [resolvable:$true] %s230
          %233 = dma.hbm_to_vmem [thread:$0]  %s228, 64, %s231, %s219
        $region28: #{tpu_custom_call.1} parent=19 // pred_fallthru
          _
        // Predicated region
        $region29: #{tpu_custom_call.1} parent=19 // pred_check
          %p234 = pneg %p127
        $region30: #{tpu_custom_call.1} parent=19 // pred_check_branch
          %236 = sbr.rel (%p234) target = $region32
        $region31: #{tpu_custom_call.1} parent=19 // pred_region
          %s237 = sand.u32 %s117, 1
          %s238 = scalar_lea.sflag [#allocation9], %s237
          %s239 = sand.u32 %s117, 1
          %s240 = smul.addr %s239, 4
          %s241 = scalar_lea.vmem [#allocation8], %s240
          %s242 = smul.u32 4, %s27
          %s244 = ssub.s32 64, 64
          %245 = vsyncadd %s238, %s244
          %s246 = smul.addr %s242, 16
          %s247 = scalar_lea.hbm %s3, %s246
          %s249 = sshll.u32 %s241, 4
          %s250 = int_to_ptr.vmem [resolvable:$true] %s249
          %252 = dma.hbm_to_vmem [thread:$0]  %s247, 64, %s250, %s238
        $region32: #{tpu_custom_call.1} parent=19 // pred_fallthru
          _
      $region20: #{tpu_custom_call.1} parent=5 // pred_fallthru
        _
      %p253 = scmp.le.s32.totalorder 1, %s20
      %p254 = scmp.lt.s32.totalorder %s20, 5
      %p255 = pnand %p253, %p254
      %p256 = pneg %p255
      // Predicated region
      $region33: #{tpu_custom_call.1} parent=5 // pred_check
        _
      $region34: #{tpu_custom_call.1} parent=5 // pred_check_branch
        %258 = sbr.rel (%p255) target = $region36
      $region35: #{tpu_custom_call.1} parent=5 // pred_region
        %s259 = ssub.s32 %s20, 1
        // Predicated region
        $region37: #{tpu_custom_call.1} parent=35 // pred_check
          %p260 = pneg %p53
        $region38: #{tpu_custom_call.1} parent=35 // pred_check_branch
          %262 = sbr.rel (%p260) target = $region40
        $region39: #{tpu_custom_call.1} parent=35 // pred_region
          %263 = dma.done [#allocation3], 512
        $region40: #{tpu_custom_call.1} parent=35 // pred_fallthru
          _
        %s264 = sand.u32 %s25, 1
        %s265 = scalar_lea.sflag [#allocation6], %s264
        %s266 = sand.u32 %s68, 1
        %s267 = smul.addr %s266, 512
        %s268 = scalar_lea.vmem [#allocation5], %s267
        // Predicated region
        $region41: #{tpu_custom_call.1} parent=35 // pred_check
          %p269 = pneg %p81
        $region42: #{tpu_custom_call.1} parent=35 // pred_check_branch
          %271 = sbr.rel (%p269) target = $region44
        $region43: #{tpu_custom_call.1} parent=35 // pred_region
          %272 = dma.done %s265, 8192
        $region44: #{tpu_custom_call.1} parent=35 // pred_fallthru
          _
        %s273 = sand.u32 %s25, 1
        %s274 = scalar_lea.sflag [#allocation6], %s273
        %s275 = sand.u32 %s94, 1
        %s276 = smul.addr %s275, 4
        %s277 = scalar_lea.vmem [#allocation7], %s276
        // Predicated region
        $region45: #{tpu_custom_call.1} parent=35 // pred_check
          %p278 = pneg %p107
        $region46: #{tpu_custom_call.1} parent=35 // pred_check_branch
          %280 = sbr.rel (%p278) target = $region48
        $region47: #{tpu_custom_call.1} parent=35 // pred_region
          %281 = dma.done %s274, 64
        $region48: #{tpu_custom_call.1} parent=35 // pred_fallthru
          _
        %s282 = sand.u32 %s120, 1
        %s283 = scalar_lea.sflag [#allocation9], %s282
        %s284 = sand.u32 %s120, 1
        %s285 = smul.addr %s284, 4
        %s286 = scalar_lea.vmem [#allocation8], %s285
        // Predicated region
        $region49: #{tpu_custom_call.1} parent=35 // pred_check
          %p287 = pneg %p133
        $region50: #{tpu_custom_call.1} parent=35 // pred_check_branch
          %289 = sbr.rel (%p287) target = $region52
        $region51: #{tpu_custom_call.1} parent=35 // pred_region
          %290 = dma.done %s283, 64
        $region52: #{tpu_custom_call.1} parent=35 // pred_fallthru
          _
        %p291 = pneg %p53
        %p292 = pneg %p50
        %s293 = sand.u32 %s25, 1
        %s294 = scalar_lea.sflag [#allocation6], %s293
        %s295 = sand.u32 %s68, 1
        %s296 = smul.addr %s295, 512
        %s297 = scalar_lea.vmem [#allocation5], %s296
        %p298 = pneg %p81
        %p299 = pneg %p78
        %s300 = sand.u32 %s25, 1
        %s301 = scalar_lea.sflag [#allocation6], %s300
        %s302 = sand.u32 %s94, 1
        %s303 = smul.addr %s302, 4
        %s304 = scalar_lea.vmem [#allocation7], %s303
        %p305 = pneg %p107
        %p306 = pneg %p104
        %s307 = sand.u32 %s120, 1
        %s308 = scalar_lea.sflag [#allocation9], %s307
        %s309 = sand.u32 %s120, 1
        %s310 = smul.addr %s309, 4
        %s311 = scalar_lea.vmem [#allocation8], %s310
        %p312 = pneg %p133
        %p313 = pneg %p130
        %p314 = pneg %p159
        %p315 = pneg %p156
        %s316 = sand.u32 %s146, 1
        %s317 = scalar_lea.sflag [#allocation4], %s316
        %s318 = sand.u32 %s146, 1
        %s319 = smul.addr %s318, 64
        %s320 = scalar_lea.vmem [#allocation10], %s319
        %s321 = smul.u32 32, %s30
        %s322 = smul.u32 4, %s29
        %s323 = smul.u32 4, %s29
        %s324 = smul.u32 4, %s29
        %s325 = smul.u32 4, %s29
        %p326 = scmp.eq.s32.totalorder %s30, 0
        // Predicated region
        $region53: #{tpu_custom_call.1} parent=35 // pred_check
          %p327 = pneg %p326
        $region54: #{tpu_custom_call.1} parent=35 // pred_check_branch
          %329 = sbr.rel (%p327) target = $region56
        $region55: #{tpu_custom_call.1} parent=35 // pred_region
          %330 = vst [vmem:[%s320] sm:$0xff] 0.0
          %331 = vst [vmem:[%s320 + $0x8] sm:$0xff] 0.0
          %332 = vst [vmem:[%s320 + $0x10] sm:$0xff] 0.0
          %333 = vst [vmem:[%s320 + $0x18] sm:$0xff] 0.0
          %334 = vst [vmem:[%s320 + $0x20] sm:$0xff] 0.0
          %335 = vst [vmem:[%s320 + $0x28] sm:$0xff] 0.0
          %336 = vst [vmem:[%s320 + $0x30] sm:$0xff] 0.0
          %337 = vst [vmem:[%s320 + $0x38] sm:$0xff] 0.0
        $region56: #{tpu_custom_call.1} parent=35 // pred_fallthru
          _
        %s338 = smul.u32 %s30, 256
        %s339 = sshra.s32 %s338, 7
        %s340 = sand.u32 %s338, 127
        %s341 = smul.addr %s339, 4
        %s342 = scalar_lea.vmem [#allocation2], %s341
        %v343 = vld [vmem:[%s342] sm:$0xff]
        %v344 = vld [vmem:[%s342 + $0x10] sm:$0xff]
        %v345 = vld [vmem:[%s320] sm:$0xff]
        %v346 = vld [vmem:[%s320 + $0x8] sm:$0xff]
        %v347 = vld [vmem:[%s320 + $0x10] sm:$0xff]
        %v348 = vld [vmem:[%s320 + $0x18] sm:$0xff]
        %v349 = vld [vmem:[%s320 + $0x20] sm:$0xff]
        %v350 = vld [vmem:[%s320 + $0x28] sm:$0xff]
        %v351 = vld [vmem:[%s320 + $0x30] sm:$0xff]
        %v352 = vld [vmem:[%s320 + $0x38] sm:$0xff]
        %v353 = vld [vmem:[%s268] sm:$0xff]
        %v354 = vld [vmem:[%s268 + $0x8] sm:$0xff]
        %v355 = vld [vmem:[%s268 + $0x10] sm:$0xff]
        %v356 = vld [vmem:[%s268 + $0x18] sm:$0xff]
        %v357 = vld [vmem:[%s268 + $0x20] sm:$0xff]
        %v358 = vld [vmem:[%s268 + $0x28] sm:$0xff]
        %v359 = vld [vmem:[%s268 + $0x30] sm:$0xff]
        %v360 = vld [vmem:[%s268 + $0x38] sm:$0xff]
        %v361 = vld [vmem:[%s268 + $0x40] sm:$0xff]
        %v362 = vld [vmem:[%s268 + $0x48] sm:$0xff]
        %v363 = vld [vmem:[%s268 + $0x50] sm:$0xff]
        %v364 = vld [vmem:[%s268 + $0x58] sm:$0xff]
        %v365 = vld [vmem:[%s268 + $0x60] sm:$0xff]
        %v366 = vld [vmem:[%s268 + $0x68] sm:$0xff]
        %v367 = vld [vmem:[%s268 + $0x70] sm:$0xff]
        %v368 = vld [vmem:[%s268 + $0x78] sm:$0xff]
        %v369 = vld [vmem:[%s268 + $0x80] sm:$0xff]
        %v370 = vld [vmem:[%s268 + $0x88] sm:$0xff]
        %v371 = vld [vmem:[%s268 + $0x90] sm:$0xff]
        %v372 = vld [vmem:[%s268 + $0x98] sm:$0xff]
        %v373 = vld [vmem:[%s268 + $0xa0] sm:$0xff]
        %v374 = vld [vmem:[%s268 + $0xa8] sm:$0xff]
        %v375 = vld [vmem:[%s268 + $0xb0] sm:$0xff]
        %v376 = vld [vmem:[%s268 + $0xb8] sm:$0xff]
        %v377 = vld [vmem:[%s268 + $0xc0] sm:$0xff]
        %v378 = vld [vmem:[%s268 + $0xc8] sm:$0xff]
        %v379 = vld [vmem:[%s268 + $0xd0] sm:$0xff]
        %v380 = vld [vmem:[%s268 + $0xd8] sm:$0xff]
        %v381 = vld [vmem:[%s268 + $0xe0] sm:$0xff]
        %v382 = vld [vmem:[%s268 + $0xe8] sm:$0xff]
        %v383 = vld [vmem:[%s268 + $0xf0] sm:$0xff]
        %v384 = vld [vmem:[%s268 + $0xf8] sm:$0xff]
        %v385 = vld [vmem:[%s268 + $0x100] sm:$0xff]
        %v386 = vld [vmem:[%s268 + $0x108] sm:$0xff]
        %v387 = vld [vmem:[%s268 + $0x110] sm:$0xff]
        %v388 = vld [vmem:[%s268 + $0x118] sm:$0xff]
        %v389 = vld [vmem:[%s268 + $0x120] sm:$0xff]
        %v390 = vld [vmem:[%s268 + $0x128] sm:$0xff]
        %v391 = vld [vmem:[%s268 + $0x130] sm:$0xff]
        %v392 = vld [vmem:[%s268 + $0x138] sm:$0xff]
        %v393 = vld [vmem:[%s268 + $0x140] sm:$0xff]
        %v394 = vld [vmem:[%s268 + $0x148] sm:$0xff]
        %v395 = vld [vmem:[%s268 + $0x150] sm:$0xff]
        %v396 = vld [vmem:[%s268 + $0x158] sm:$0xff]
        %v397 = vld [vmem:[%s268 + $0x160] sm:$0xff]
        %v398 = vld [vmem:[%s268 + $0x168] sm:$0xff]
        %v399 = vld [vmem:[%s268 + $0x170] sm:$0xff]
        %v400 = vld [vmem:[%s268 + $0x178] sm:$0xff]
        %v401 = vld [vmem:[%s268 + $0x180] sm:$0xff]
        %v402 = vld [vmem:[%s268 + $0x188] sm:$0xff]
        %v403 = vld [vmem:[%s268 + $0x190] sm:$0xff]
        %v404 = vld [vmem:[%s268 + $0x198] sm:$0xff]
        %v405 = vld [vmem:[%s268 + $0x1a0] sm:$0xff]
        %v406 = vld [vmem:[%s268 + $0x1a8] sm:$0xff]
        %v407 = vld [vmem:[%s268 + $0x1b0] sm:$0xff]
        %v408 = vld [vmem:[%s268 + $0x1b8] sm:$0xff]
        %v409 = vld [vmem:[%s268 + $0x1c0] sm:$0xff]
        %v410 = vld [vmem:[%s268 + $0x1c8] sm:$0xff]
        %v411 = vld [vmem:[%s268 + $0x1d0] sm:$0xff]
        %v412 = vld [vmem:[%s268 + $0x1d8] sm:$0xff]
        %v413 = vld [vmem:[%s268 + $0x1e0] sm:$0xff]
        %v414 = vld [vmem:[%s268 + $0x1e8] sm:$0xff]
        %v415 = vld [vmem:[%s268 + $0x1f0] sm:$0xff]
        %v416 = vld [vmem:[%s268 + $0x1f8] sm:$0xff]
        %v419 = vunpack.c.l.b16 %v343
        %v420 = vunpack.c.h.b16 %v343
        %v421 = vunpack.c.l.b16 %v344
        %v422 = vunpack.c.h.b16 %v344
        %v423 = vpack.c.b16 %v421, %v419
        %v424 = vpack.c.b16 %v422, %v420
        %v491 = vunpack.c.l.b16 %v353
        %v492 = vunpack.c.h.b16 %v353
        %v493 = vunpack.c.l.b16 %v354
        %v494 = vunpack.c.h.b16 %v354
        %v495 = vunpack.c.l.b16 %v355
        %v496 = vunpack.c.h.b16 %v355
        %v497 = vunpack.c.l.b16 %v356
        %v498 = vunpack.c.h.b16 %v356
        %v499 = vunpack.c.l.b16 %v357
        %v500 = vunpack.c.h.b16 %v357
        %v501 = vunpack.c.l.b16 %v358
        %v502 = vunpack.c.h.b16 %v358
        %v503 = vunpack.c.l.b16 %v359
        %v504 = vunpack.c.h.b16 %v359
        %v505 = vunpack.c.l.b16 %v360
        %v506 = vunpack.c.h.b16 %v360
        %v507 = vunpack.c.l.b16 %v361
        %v508 = vunpack.c.h.b16 %v361
        %v509 = vunpack.c.l.b16 %v362
        %v510 = vunpack.c.h.b16 %v362
        %v511 = vunpack.c.l.b16 %v363
        %v512 = vunpack.c.h.b16 %v363
        %v513 = vunpack.c.l.b16 %v364
        %v514 = vunpack.c.h.b16 %v364
        %v515 = vunpack.c.l.b16 %v365
        %v516 = vunpack.c.h.b16 %v365
        %v517 = vunpack.c.l.b16 %v366
        %v518 = vunpack.c.h.b16 %v366
        %v519 = vunpack.c.l.b16 %v367
        %v520 = vunpack.c.h.b16 %v367
        %v521 = vunpack.c.l.b16 %v368
        %v522 = vunpack.c.h.b16 %v368
        %v523 = vunpack.c.l.b16 %v369
        %v524 = vunpack.c.h.b16 %v369
        %v525 = vunpack.c.l.b16 %v370
        %v526 = vunpack.c.h.b16 %v370
        %v527 = vunpack.c.l.b16 %v371
        %v528 = vunpack.c.h.b16 %v371
        %v529 = vunpack.c.l.b16 %v372
        %v530 = vunpack.c.h.b16 %v372
        %v531 = vunpack.c.l.b16 %v373
        %v532 = vunpack.c.h.b16 %v373
        %v533 = vunpack.c.l.b16 %v374
        %v534 = vunpack.c.h.b16 %v374
        %v535 = vunpack.c.l.b16 %v375
        %v536 = vunpack.c.h.b16 %v375
        %v537 = vunpack.c.l.b16 %v376
        %v538 = vunpack.c.h.b16 %v376
        %v539 = vunpack.c.l.b16 %v377
        %v540 = vunpack.c.h.b16 %v377
        %v541 = vunpack.c.l.b16 %v378
        %v542 = vunpack.c.h.b16 %v378
        %v543 = vunpack.c.l.b16 %v379
        %v544 = vunpack.c.h.b16 %v379
        %v545 = vunpack.c.l.b16 %v380
        %v546 = vunpack.c.h.b16 %v380
        %v547 = vunpack.c.l.b16 %v381
        %v548 = vunpack.c.h.b16 %v381
        %v549 = vunpack.c.l.b16 %v382
        %v550 = vunpack.c.h.b16 %v382
        %v551 = vunpack.c.l.b16 %v383
        %v552 = vunpack.c.h.b16 %v383
        %v553 = vunpack.c.l.b16 %v384
        %v554 = vunpack.c.h.b16 %v384
        %v555 = vunpack.c.l.b16 %v385
        %v556 = vunpack.c.h.b16 %v385
        %v557 = vunpack.c.l.b16 %v386
        %v558 = vunpack.c.h.b16 %v386
        %v559 = vunpack.c.l.b16 %v387
        %v560 = vunpack.c.h.b16 %v387
        %v561 = vunpack.c.l.b16 %v388
        %v562 = vunpack.c.h.b16 %v388
        %v563 = vunpack.c.l.b16 %v389
        %v564 = vunpack.c.h.b16 %v389
        %v565 = vunpack.c.l.b16 %v390
        %v566 = vunpack.c.h.b16 %v390
        %v567 = vunpack.c.l.b16 %v391
        %v568 = vunpack.c.h.b16 %v391
        %v569 = vunpack.c.l.b16 %v392
        %v570 = vunpack.c.h.b16 %v392
        %v571 = vunpack.c.l.b16 %v393
        %v572 = vunpack.c.h.b16 %v393
        %v573 = vunpack.c.l.b16 %v394
        %v574 = vunpack.c.h.b16 %v394
        %v575 = vunpack.c.l.b16 %v395
        %v576 = vunpack.c.h.b16 %v395
        %v577 = vunpack.c.l.b16 %v396
        %v578 = vunpack.c.h.b16 %v396
        %v579 = vunpack.c.l.b16 %v397
        %v580 = vunpack.c.h.b16 %v397
        %v581 = vunpack.c.l.b16 %v398
        %v582 = vunpack.c.h.b16 %v398
        %v583 = vunpack.c.l.b16 %v399
        %v584 = vunpack.c.h.b16 %v399
        %v585 = vunpack.c.l.b16 %v400
        %v586 = vunpack.c.h.b16 %v400
        %v587 = vunpack.c.l.b16 %v401
        %v588 = vunpack.c.h.b16 %v401
        %v589 = vunpack.c.l.b16 %v402
        %v590 = vunpack.c.h.b16 %v402
        %v591 = vunpack.c.l.b16 %v403
        %v592 = vunpack.c.h.b16 %v403
        %v593 = vunpack.c.l.b16 %v404
        %v594 = vunpack.c.h.b16 %v404
        %v595 = vunpack.c.l.b16 %v405
        %v596 = vunpack.c.h.b16 %v405
        %v597 = vunpack.c.l.b16 %v406
        %v598 = vunpack.c.h.b16 %v406
        %v599 = vunpack.c.l.b16 %v407
        %v600 = vunpack.c.h.b16 %v407
        %v601 = vunpack.c.l.b16 %v408
        %v602 = vunpack.c.h.b16 %v408
        %v603 = vunpack.c.l.b16 %v409
        %v604 = vunpack.c.h.b16 %v409
        %v605 = vunpack.c.l.b16 %v410
        %v606 = vunpack.c.h.b16 %v410
        %v607 = vunpack.c.l.b16 %v411
        %v608 = vunpack.c.h.b16 %v411
        %v609 = vunpack.c.l.b16 %v412
        %v610 = vunpack.c.h.b16 %v412
        %v611 = vunpack.c.l.b16 %v413
        %v612 = vunpack.c.h.b16 %v413
        %v613 = vunpack.c.l.b16 %v414
        %v614 = vunpack.c.h.b16 %v414
        %v615 = vunpack.c.l.b16 %v415
        %v616 = vunpack.c.h.b16 %v415
        %v617 = vunpack.c.l.b16 %v416
        %v618 = vunpack.c.h.b16 %v416
        %v619 = vpack.c.b16 %v495, %v491
        %v620 = vpack.c.b16 %v496, %v492
        %v621 = vpack.c.b16 %v497, %v493
        %v622 = vpack.c.b16 %v498, %v494
        %v623 = vpack.c.b16 %v503, %v499
        %v624 = vpack.c.b16 %v504, %v500
        %v625 = vpack.c.b16 %v505, %v501
        %v626 = vpack.c.b16 %v506, %v502
        %v627 = vpack.c.b16 %v511, %v507
        %v628 = vpack.c.b16 %v512, %v508
        %v629 = vpack.c.b16 %v513, %v509
        %v630 = vpack.c.b16 %v514, %v510
        %v631 = vpack.c.b16 %v519, %v515
        %v632 = vpack.c.b16 %v520, %v516
        %v633 = vpack.c.b16 %v521, %v517
        %v634 = vpack.c.b16 %v522, %v518
        %v635 = vpack.c.b16 %v527, %v523
        %v636 = vpack.c.b16 %v528, %v524
        %v637 = vpack.c.b16 %v529, %v525
        %v638 = vpack.c.b16 %v530, %v526
        %v639 = vpack.c.b16 %v535, %v531
        %v640 = vpack.c.b16 %v536, %v532
        %v641 = vpack.c.b16 %v537, %v533
        %v642 = vpack.c.b16 %v538, %v534
        %v643 = vpack.c.b16 %v543, %v539
        %v644 = vpack.c.b16 %v544, %v540
        %v645 = vpack.c.b16 %v545, %v541
        %v646 = vpack.c.b16 %v546, %v542
        %v647 = vpack.c.b16 %v551, %v547
        %v648 = vpack.c.b16 %v552, %v548
        %v649 = vpack.c.b16 %v553, %v549
        %v650 = vpack.c.b16 %v554, %v550
        %v651 = vpack.c.b16 %v559, %v555
        %v652 = vpack.c.b16 %v560, %v556
        %v653 = vpack.c.b16 %v561, %v557
        %v654 = vpack.c.b16 %v562, %v558
        %v655 = vpack.c.b16 %v567, %v563
        %v656 = vpack.c.b16 %v568, %v564
        %v657 = vpack.c.b16 %v569, %v565
        %v658 = vpack.c.b16 %v570, %v566
        %v659 = vpack.c.b16 %v575, %v571
        %v660 = vpack.c.b16 %v576, %v572
        %v661 = vpack.c.b16 %v577, %v573
        %v662 = vpack.c.b16 %v578, %v574
        %v663 = vpack.c.b16 %v583, %v579
        %v664 = vpack.c.b16 %v584, %v580
        %v665 = vpack.c.b16 %v585, %v581
        %v666 = vpack.c.b16 %v586, %v582
        %v667 = vpack.c.b16 %v591, %v587
        %v668 = vpack.c.b16 %v592, %v588
        %v669 = vpack.c.b16 %v593, %v589
        %v670 = vpack.c.b16 %v594, %v590
        %v671 = vpack.c.b16 %v599, %v595
        %v672 = vpack.c.b16 %v600, %v596
        %v673 = vpack.c.b16 %v601, %v597
        %v674 = vpack.c.b16 %v602, %v598
        %v675 = vpack.c.b16 %v607, %v603
        %v676 = vpack.c.b16 %v608, %v604
        %v677 = vpack.c.b16 %v609, %v605
        %v678 = vpack.c.b16 %v610, %v606
        %v679 = vpack.c.b16 %v615, %v611
        %v680 = vpack.c.b16 %v616, %v612
        %v681 = vpack.c.b16 %v617, %v613
        %v682 = vpack.c.b16 %v618, %v614
        %747 = vmatprep.subr.bf16.mxu0 %v648
        %748 = vmatpush1.bf16.msra.mxu0 %v647
        %749 = vmatprep.subr.bf16.mxu0 %v644
        %750 = vmatpush1.bf16.msra.mxu0 %v643
        %751 = vmatprep.subr.bf16.mxu0 %v640
        %752 = vmatpush1.bf16.msra.mxu0 %v639
        %753 = vmatprep.subr.bf16.mxu0 %v636
        %754 = vmatpush1.bf16.msra.mxu0 %v635
        %755 = vmatprep.subr.bf16.mxu0 %v632
        %756 = vmatpush1.bf16.msra.mxu0 %v631
        %757 = vmatprep.subr.bf16.mxu0 %v628
        %758 = vmatpush1.bf16.msra.mxu0 %v627
        %759 = vmatprep.subr.bf16.mxu0 %v624
        %760 = vmatpush1.bf16.msra.mxu0 %v623
        %761 = vmatprep.subr.bf16.mxu0 %v620
        %762 = vmatpush1.bf16.msra.mxu0 %v619
        %763 = vmatprep.subr.bf16.mxu0 %v680
        %764 = vmatpush2.bf16.msra.mxu0 %v679
        %765 = vmatprep.subr.bf16.mxu0 %v676
        %766 = vmatpush2.bf16.msra.mxu0 %v675
        %767 = vmatprep.subr.bf16.mxu0 %v672
        %768 = vmatpush2.bf16.msra.mxu0 %v671
        %769 = vmatprep.subr.bf16.mxu0 %v668
        %770 = vmatpush2.bf16.msra.mxu0 %v667
        %771 = vmatprep.subr.bf16.mxu0 %v664
        %772 = vmatpush2.bf16.msra.mxu0 %v663
        %773 = vmatprep.subr.bf16.mxu0 %v660
        %774 = vmatpush2.bf16.msra.mxu0 %v659
        %775 = vmatprep.subr.bf16.mxu0 %v656
        %776 = vmatpush2.bf16.msra.mxu0 %v655
        %777 = vmatprep.subr.bf16.mxu0 %v652
        %778 = vmatpush2.bf16.msra.mxu0 %v651
        %779 = vmatprep.mubr.bf16.mxu0 %v424
        %780 = vmatmul.mubr.bf16.gmra.mxu0 %v423
        %v781 = vpop.f32.mrf.mxu0
        %v782 = vadd.f32 0.0, %v781
        %v783 = vpop.f32.mrf.mxu0
        %v784 = vadd.f32 0.0, %v783
        %v785 = vpop.f32.mrf.mxu0
        %v786 = vadd.f32 0.0, %v785
        %v787 = vpop.f32.mrf.mxu0
        %v788 = vadd.f32 0.0, %v787
        %789 = vdwg.mxu0
        %790 = vmatprep.subr.bf16.mxu0 %v650
        %791 = vmatpush1.bf16.msra.mxu0 %v649
        %792 = vmatprep.subr.bf16.mxu0 %v646
        %793 = vmatpush1.bf16.msra.mxu0 %v645
        %794 = vmatprep.subr.bf16.mxu0 %v642
        %795 = vmatpush1.bf16.msra.mxu0 %v641
        %796 = vmatprep.subr.bf16.mxu0 %v638
        %797 = vmatpush1.bf16.msra.mxu0 %v637
        %798 = vmatprep.subr.bf16.mxu0 %v634
        %799 = vmatpush1.bf16.msra.mxu0 %v633
        %800 = vmatprep.subr.bf16.mxu0 %v630
        %801 = vmatpush1.bf16.msra.mxu0 %v629
        %802 = vmatprep.subr.bf16.mxu0 %v626
        %803 = vmatpush1.bf16.msra.mxu0 %v625
        %804 = vmatprep.subr.bf16.mxu0 %v622
        %805 = vmatpush1.bf16.msra.mxu0 %v621
        %806 = vmatprep.subr.bf16.mxu0 %v682
        %807 = vmatpush2.bf16.msra.mxu0 %v681
        %808 = vmatprep.subr.bf16.mxu0 %v678
        %809 = vmatpush2.bf16.msra.mxu0 %v677
        %810 = vmatprep.subr.bf16.mxu0 %v674
        %811 = vmatpush2.bf16.msra.mxu0 %v673
        %812 = vmatprep.subr.bf16.mxu0 %v670
        %813 = vmatpush2.bf16.msra.mxu0 %v669
        %814 = vmatprep.subr.bf16.mxu0 %v666
        %815 = vmatpush2.bf16.msra.mxu0 %v665
        %816 = vmatprep.subr.bf16.mxu0 %v662
        %817 = vmatpush2.bf16.msra.mxu0 %v661
        %818 = vmatprep.subr.bf16.mxu0 %v658
        %819 = vmatpush2.bf16.msra.mxu0 %v657
        %820 = vmatprep.subr.bf16.mxu0 %v654
        %821 = vmatpush2.bf16.msra.mxu0 %v653
        %822 = vmatprep.mubr.bf16.mxu0 %v424
        %823 = vmatmul.mubr.bf16.gmra.mxu0 %v423
        %v824 = vpop.f32.mrf.mxu0
        %v825 = vadd.f32 0.0, %v824
        %v826 = vpop.f32.mrf.mxu0
        %v827 = vadd.f32 0.0, %v826
        %v828 = vpop.f32.mrf.mxu0
        %v829 = vadd.f32 0.0, %v828
        %v830 = vpop.f32.mrf.mxu0
        %v831 = vadd.f32 0.0, %v830
        %832 = vdwg.mxu0
        %v833 = vadd.f32 %v345, %v782
        %v834 = vadd.f32 %v346, %v784
        %v835 = vadd.f32 %v347, %v825
        %v836 = vadd.f32 %v348, %v827
        %v837 = vadd.f32 %v349, %v786
        %v838 = vadd.f32 %v350, %v788
        %v839 = vadd.f32 %v351, %v829
        %v840 = vadd.f32 %v352, %v831
        %841 = vst [vmem:[%s320] sm:$0xff] %v833
        %842 = vst [vmem:[%s320 + $0x8] sm:$0xff] %v834
        %843 = vst [vmem:[%s320 + $0x10] sm:$0xff] %v835
        %844 = vst [vmem:[%s320 + $0x18] sm:$0xff] %v836
        %845 = vst [vmem:[%s320 + $0x20] sm:$0xff] %v837
        %846 = vst [vmem:[%s320 + $0x28] sm:$0xff] %v838
        %847 = vst [vmem:[%s320 + $0x30] sm:$0xff] %v839
        %848 = vst [vmem:[%s320 + $0x38] sm:$0xff] %v840
        %p849 = scmp.eq.s32.totalorder %s30, 1
        // Predicated region
        $region57: #{tpu_custom_call.1} parent=35 // pred_check
          %p850 = pneg %p849
        $region58: #{tpu_custom_call.1} parent=35 // pred_check_branch
          %852 = sbr.rel (%p850) target = $region60
        $region59: #{tpu_custom_call.1} parent=35 // pred_region
          %v853 = vld [vmem:[%s320] sm:$0xff]
          %v854 = vld [vmem:[%s320 + $0x8] sm:$0xff]
          %v855 = vld [vmem:[%s320 + $0x10] sm:$0xff]
          %v856 = vld [vmem:[%s320 + $0x18] sm:$0xff]
          %v857 = vld [vmem:[%s320 + $0x20] sm:$0xff]
          %v858 = vld [vmem:[%s320 + $0x28] sm:$0xff]
          %v859 = vld [vmem:[%s320 + $0x30] sm:$0xff]
          %v860 = vld [vmem:[%s320 + $0x38] sm:$0xff]
          %v861 = vadd.f32 %v853, %v857
          %v862 = vrot.slane %v861, 4
          %v863 = vadd.f32 %v861, %v862
          %v864 = vrot.slane %v863, 2
          %v865 = vadd.f32 %v863, %v864
          %v866 = vrot.slane %v865, 1
          %v867 = vadd.f32 %v865, %v866
          %v868 = vadd.f32 %v854, %v858
          %v869 = vrot.slane %v868, 4
          %v870 = vadd.f32 %v868, %v869
          %v871 = vrot.slane %v870, 2
          %v872 = vadd.f32 %v870, %v871
          %v873 = vrot.slane %v872, 1
          %v874 = vadd.f32 %v872, %v873
          %v875 = vadd.f32 %v855, %v859
          %v876 = vrot.slane %v875, 4
          %v877 = vadd.f32 %v875, %v876
          %v878 = vrot.slane %v877, 2
          %v879 = vadd.f32 %v877, %v878
          %v880 = vrot.slane %v879, 1
          %v881 = vadd.f32 %v879, %v880
          %v882 = vadd.f32 %v856, %v860
          %v883 = vrot.slane %v882, 4
          %v884 = vadd.f32 %v882, %v883
          %v885 = vrot.slane %v884, 2
          %v886 = vadd.f32 %v884, %v885
          %v887 = vrot.slane %v886, 1
          %v888 = vadd.f32 %v886, %v887
          %v889 = vmul.f32 %v853, %v853
          %v890 = vmul.f32 %v854, %v854
          %v891 = vmul.f32 %v855, %v855
          %v892 = vmul.f32 %v856, %v856
          %v893 = vmul.f32 %v857, %v857
          %v894 = vmul.f32 %v858, %v858
          %v895 = vmul.f32 %v859, %v859
          %v896 = vmul.f32 %v860, %v860
          %v897 = vadd.f32 %v889, %v893
          %v898 = vrot.slane %v897, 4
          %v899 = vadd.f32 %v897, %v898
          %v900 = vrot.slane %v899, 2
          %v901 = vadd.f32 %v899, %v900
          %v902 = vrot.slane %v901, 1
          %v903 = vadd.f32 %v901, %v902
          %v904 = vadd.f32 %v890, %v894
          %v905 = vrot.slane %v904, 4
          %v906 = vadd.f32 %v904, %v905
          %v907 = vrot.slane %v906, 2
          %v908 = vadd.f32 %v906, %v907
          %v909 = vrot.slane %v908, 1
          %v910 = vadd.f32 %v908, %v909
          %v911 = vadd.f32 %v891, %v895
          %v912 = vrot.slane %v911, 4
          %v913 = vadd.f32 %v911, %v912
          %v914 = vrot.slane %v913, 2
          %v915 = vadd.f32 %v913, %v914
          %v916 = vrot.slane %v915, 1
          %v917 = vadd.f32 %v915, %v916
          %v918 = vadd.f32 %v892, %v896
          %v919 = vrot.slane %v918, 4
          %v920 = vadd.f32 %v918, %v919
          %v921 = vrot.slane %v920, 2
          %v922 = vadd.f32 %v920, %v921
          %v923 = vrot.slane %v922, 1
          %v924 = vadd.f32 %v922, %v923
          %v925 = vmul.f32 %v867, 0.083333336
          %v926 = vmul.f32 %v874, 0.083333336
          %v927 = vmul.f32 %v881, 0.083333336
          %v928 = vmul.f32 %v888, 0.083333336
          %v929 = vmul.f32 %v903, 0.083333336
          %v930 = vmul.f32 %v910, 0.083333336
          %v931 = vmul.f32 %v917, 0.083333336
          %v932 = vmul.f32 %v924, 0.083333336
          %v933 = vmul.f32 %v925, %v925
          %v934 = vmul.f32 %v926, %v926
          %v935 = vmul.f32 %v927, %v927
          %v936 = vmul.f32 %v928, %v928
          %v937 = vsub.f32 %v929, %v933
          %v938 = vsub.f32 %v930, %v934
          %v939 = vsub.f32 %v931, %v935
          %v940 = vsub.f32 %v932, %v936
          %v941 = vmax.f32 %v937, 0.0
          %v942 = vmax.f32 %v938, 0.0
          %v943 = vmax.f32 %v939, 0.0
          %v944 = vmax.f32 %v940, 0.0
          %v945 = vld [vmem:[%s277] sm:$0xf]
          %v946 = vadd.f32 %v941, 1e-05
          %v947 = vadd.f32 %v942, 1e-05
          %v948 = vadd.f32 %v943, 1e-05
          %v949 = vadd.f32 %v944, 1e-05
          %v950 = vrsqrt.pop %v946
          %v951 = vrsqrt.pop %v947
          %v952 = vrsqrt.pop %v948
          %v953 = vrsqrt.pop %v949
          %v958 = vcombine.low %v950, %v951
          %v959 = vcombine.low %v952, %v953
          %v961 = vunpack.c.l.s4 1966171168
          %v962 = vunpack.c.0.s8 %v961
          %v963 = vlaneseq
          %v964 = vshrl.u32 %v963, 7
          %v965 = vsub.s32 %v962, %v964
          %v966 = vrot.slane %v958, %v965
          %v968 = vunpack.c.l.s4 1966171168
          %v969 = vunpack.c.0.s8 %v968
          %v970 = vlaneseq
          %v971 = vshrl.u32 %v970, 7
          %v972 = vsub.s32 %v969, %v971
          %v973 = vrot.slane %v959, %v972
          %v974 = vcombine.low %v966, %v973
          %v976 = vunpack.c.l.s4 1966171168
          %v977 = vunpack.c.0.s8 %v976
          %v978 = vlaneseq
          %v979 = vshrl.u32 %v978, 7
          %v980 = vsub.s32 %v977, %v979
          %v981 = vrot.slane %v974, %v980
          %v983 = vmul.f32 %v945, %v981
          %v984 = vld [vmem:[%s286] sm:$0xf]
          %v986 = vlaneseq
          %v987 = vshrl.u32 %v986, 7
          %v988 = vsub.s32 0, %v987
          %v989 = vrot.slane %v983, %v988
          %v990 = vlaneseq
          %v991 = vshrl.u32 %v990, 7
          %v992 = vsub.s32 1, %v991
          %v993 = vrot.slane %v983, %v992
          %v994 = vlaneseq
          %v995 = vshrl.u32 %v994, 7
          %v996 = vsub.s32 2, %v995
          %v997 = vrot.slane %v983, %v996
          %v998 = vlaneseq
          %v999 = vshrl.u32 %v998, 7
          %v1000 = vsub.s32 3, %v999
          %v1001 = vrot.slane %v983, %v1000
          %v1006 = vmul.f32 %v925, %v989
          %v1007 = vmul.f32 %v926, %v993
          %v1008 = vmul.f32 %v927, %v997
          %v1009 = vmul.f32 %v928, %v1001
          %v1014 = vcombine.low %v1006, %v1007
          %v1015 = vcombine.low %v1008, %v1009
          %v1017 = vunpack.c.l.s4 1966171168
          %v1018 = vunpack.c.0.s8 %v1017
          %v1019 = vlaneseq
          %v1020 = vshrl.u32 %v1019, 7
          %v1021 = vsub.s32 %v1018, %v1020
          %v1022 = vrot.slane %v1014, %v1021
          %v1024 = vunpack.c.l.s4 1966171168
          %v1025 = vunpack.c.0.s8 %v1024
          %v1026 = vlaneseq
          %v1027 = vshrl.u32 %v1026, 7
          %v1028 = vsub.s32 %v1025, %v1027
          %v1029 = vrot.slane %v1015, %v1028
          %v1030 = vcombine.low %v1022, %v1029
          %v1032 = vunpack.c.l.s4 1966171168
          %v1033 = vunpack.c.0.s8 %v1032
          %v1034 = vlaneseq
          %v1035 = vshrl.u32 %v1034, 7
          %v1036 = vsub.s32 %v1033, %v1035
          %v1037 = vrot.slane %v1030, %v1036
          %v1039 = vsub.f32 %v984, %v1037
          %v1040 = vmul.f32 %v853, %v989
          %v1041 = vmul.f32 %v854, %v993
          %v1042 = vmul.f32 %v855, %v997
          %v1043 = vmul.f32 %v856, %v1001
          %v1044 = vmul.f32 %v857, %v989
          %v1045 = vmul.f32 %v858, %v993
          %v1046 = vmul.f32 %v859, %v997
          %v1047 = vmul.f32 %v860, %v1001
          %v1049 = vlaneseq
          %v1050 = vshrl.u32 %v1049, 7
          %v1051 = vsub.s32 0, %v1050
          %v1052 = vrot.slane %v1039, %v1051
          %v1053 = vlaneseq
          %v1054 = vshrl.u32 %v1053, 7
          %v1055 = vsub.s32 1, %v1054
          %v1056 = vrot.slane %v1039, %v1055
          %v1057 = vlaneseq
          %v1058 = vshrl.u32 %v1057, 7
          %v1059 = vsub.s32 2, %v1058
          %v1060 = vrot.slane %v1039, %v1059
          %v1061 = vlaneseq
          %v1062 = vshrl.u32 %v1061, 7
          %v1063 = vsub.s32 3, %v1062
          %v1064 = vrot.slane %v1039, %v1063
          %v1069 = vadd.f32 %v1040, %v1052
          %v1070 = vadd.f32 %v1041, %v1056
          %v1071 = vadd.f32 %v1042, %v1060
          %v1072 = vadd.f32 %v1043, %v1064
          %v1073 = vadd.f32 %v1044, %v1052
          %v1074 = vadd.f32 %v1045, %v1056
          %v1075 = vadd.f32 %v1046, %v1060
          %v1076 = vadd.f32 %v1047, %v1064
          %v1077 = vmax.f32 %v1069, 0.0
          %v1078 = vmax.f32 %v1070, 0.0
          %v1079 = vmax.f32 %v1071, 0.0
          %v1080 = vmax.f32 %v1072, 0.0
          %v1081 = vmax.f32 %v1073, 0.0
          %v1082 = vmax.f32 %v1074, 0.0
          %v1083 = vmax.f32 %v1075, 0.0
          %v1084 = vmax.f32 %v1076, 0.0
          %1085 = vst [vmem:[%s320] sm:$0xff] %v1077
          %1086 = vst [vmem:[%s320 + $0x8] sm:$0xff] %v1078
          %1087 = vst [vmem:[%s320 + $0x10] sm:$0xff] %v1079
          %1088 = vst [vmem:[%s320 + $0x18] sm:$0xff] %v1080
          %1089 = vst [vmem:[%s320 + $0x20] sm:$0xff] %v1081
          %1090 = vst [vmem:[%s320 + $0x28] sm:$0xff] %v1082
          %1091 = vst [vmem:[%s320 + $0x30] sm:$0xff] %v1083
          %1092 = vst [vmem:[%s320 + $0x38] sm:$0xff] %v1084
        $region60: #{tpu_custom_call.1} parent=35 // pred_fallthru
          _
        %s1093 = sand.u32 %s146, 1
        %s1094 = scalar_lea.sflag [#allocation4], %s1093
        %s1095 = sand.u32 %s146, 1
        %s1096 = smul.addr %s1095, 64
        %s1097 = scalar_lea.vmem [#allocation10], %s1096
        // Predicated region
        $region61: #{tpu_custom_call.1} parent=35 // pred_check
          %p1098 = pneg %p156
        $region62: #{tpu_custom_call.1} parent=35 // pred_check_branch
          %1100 = sbr.rel (%p1098) target = $region64
        $region63: #{tpu_custom_call.1} parent=35 // pred_region
          %s1101 = smul.u32 4, %s29
          %s1103 = ssub.s32 1024, 1024
          %1104 = vsyncadd %s1094, %s1103
          %s1105 = smul.addr %s1101, 128
          %s1106 = scalar_lea.hbm %s4, %s1105
          %s1107 = sshll.u32 %s1097, 4
          %s1108 = int_to_ptr.vmem [resolvable:$true] %s1107
          %1113 = dma.vmem_to_hbm [thread:$0]  %s1108, 1024, %s1106, %s1094, 512, 1024, 32
        $region64: #{tpu_custom_call.1} parent=35 // pred_fallthru
          _
      $region36: #{tpu_custom_call.1} parent=5 // pred_fallthru
        _
      %p1114 = scmp.le.s32.totalorder 2, %s20
      // Predicated region
      $region65: #{tpu_custom_call.1} parent=5 // pred_check
        %p1115 = pneg %p1114
      $region66: #{tpu_custom_call.1} parent=5 // pred_check_branch
        %1117 = sbr.rel (%p1115) target = $region68
      $region67: #{tpu_custom_call.1} parent=5 // pred_region
        %s1118 = ssub.s32 %s20, 2
        // Predicated region
        $region69: #{tpu_custom_call.1} parent=67 // pred_check
          %p1119 = pneg %p162
        $region70: #{tpu_custom_call.1} parent=67 // pred_check_branch
          %1121 = sbr.rel (%p1119) target = $region72
        $region71: #{tpu_custom_call.1} parent=67 // pred_region
          %s1122 = sand.u32 %s147, 1
          %s1123 = scalar_lea.sflag [#allocation4], %s1122
          %s1124 = sand.u32 %s147, 1
          %s1125 = smul.addr %s1124, 64
          %s1126 = scalar_lea.vmem [#allocation10], %s1125
          %1127 = dma.done %s1123, 1024
        $region72: #{tpu_custom_call.1} parent=67 // pred_fallthru
          _
      $region68: #{tpu_custom_call.1} parent=5 // pred_fallthru
        _
    $region6: #{tpu_custom_call.1} parent=1 // loop_footer
      %s24 = sadd.s32 1, %s20
    $region7: #{tpu_custom_call.1} parent=1 // loop_footer_branch
      %19 = sbr.rel target = $region3
    $region8: #{tpu_custom_call.1} parent=1 // loop_exit
      _
    %1128 = vsyncpa [#allocation3], 1
    %s1129 = scalar_lea.sflag [#allocation3], 1
    %1130 = vsyncpa %s1129, 1
    %1131 = vsyncpa [#allocation6], 1
    %s1132 = scalar_lea.sflag [#allocation6], 1
    %1133 = vsyncpa %s1132, 1
    %1134 = vsyncpa [#allocation9], 1
    %s1135 = scalar_lea.sflag [#allocation9], 1
    %1136 = vsyncpa %s1135, 1
    %1137 = vsyncpa [#allocation4], 1
    %s1138 = scalar_lea.sflag [#allocation4], 1
    %1139 = vsyncpa %s1138, 1

</llo_original>
